<compile_context>
chip_gen: v7x
topology: tpu7x:2x2x1
jax: 0.10.0
libtpu: 0.0.40
codegen_flags: <defaults>
</compile_context>

<pallas_src>
import jax
import jax.numpy as jnp
from jax.experimental import pallas as pl
from jax.experimental.pallas import tpu as pltpu


# ---------------------------------------------------------------------------
# Tiling / compiler-param helpers
# ---------------------------------------------------------------------------

def _round_up(x, m):
    return ((x + m - 1) // m) * m


def _pick_row_tile(T, tm_max=256):
    """Biggest sublane-aligned row tile <= tm_max.  If the whole problem fits in a
    single tile but is large enough to split, use two tiles so the 'parallel' grid
    axis can shard across both v7x TensorCores."""
    T8 = _round_up(T, 8)
    if T8 <= tm_max:
        return _round_up((T + 1) // 2, 8) if T > 128 else T8
    return tm_max


def _compiler_params(vmem_estimate_bytes):
    kwargs = dict(dimension_semantics=("parallel",))
    if vmem_estimate_bytes > (28 << 20):
        # Raise the scoped-VMEM limit above the 32 MiB default only when needed;
        # cap at 64 MiB so the same code still fits v7x's smaller physical VMEM.
        kwargs["vmem_limit_bytes"] = int(min(vmem_estimate_bytes + (4 << 20), 64 << 20))
    return pltpu.CompilerParams(**kwargs)


# ---------------------------------------------------------------------------
# Pallas kernels
# ---------------------------------------------------------------------------

def _mlp_kernel(x1_ref, x2_ref, x3_ref, e_ref,
                w1_ref, b1_ref, w2_ref, b2_ref, w3_ref, b3_ref, o_ref):
    """Fused Linear(6H->6H) + ReLU + Linear(6H->3H) + ReLU + Linear(3H->H).

    The 6H-wide first contraction is split into four partial MXU matmuls against
    row-slices of W1, so the [T, 6H] concat never exists in HBM or VMEM.
    Weights are bf16; accumulation is f32.  Assumes hid_dim % 16 == 0 so the
    static W1 row-slices stay aligned to bf16 sublane packing.
    """
    H = x1_ref.shape[1]
    bf16, f32 = jnp.bfloat16, jnp.float32
    h = (jnp.dot(x1_ref[...].astype(bf16), w1_ref[0 * H:1 * H, :], preferred_element_type=f32)
         + jnp.dot(x2_ref[...].astype(bf16), w1_ref[1 * H:2 * H, :], preferred_element_type=f32)
         + jnp.dot(x3_ref[...].astype(bf16), w1_ref[2 * H:3 * H, :], preferred_element_type=f32)
         + jnp.dot(e_ref[...].astype(bf16), w1_ref[3 * H:6 * H, :], preferred_element_type=f32)
         + b1_ref[...])
    h = jnp.maximum(h, 0.0)
    h = jnp.dot(h.astype(bf16), w2_ref[...], preferred_element_type=f32) + b2_ref[...]
    h = jnp.maximum(h, 0.0)
    o = jnp.dot(h.astype(bf16), w3_ref[...], preferred_element_type=f32) + b3_ref[...]
    o_ref[...] = o.astype(o_ref.dtype)


def _add6_kernel(x1_ref, x2_ref, x3_ref, e_ref, o_ref):
    """Fused 6-way elementwise sum for the 'add' mode.

    e_ref is the lane-dense [tm, 3H] view of edge_attr; the three H-wide lane
    slices are summed in-register (no strided HBM gathers, no intermediates).
    """
    H = o_ref.shape[1]
    e = e_ref[...]
    o_ref[...] = (x1_ref[...] + x2_ref[...] + x3_ref[...]
                  + e[:, 0 * H:1 * H] + e[:, 1 * H:2 * H] + e[:, 2 * H:3 * H])


# ---------------------------------------------------------------------------
# Pallas wrappers
# ---------------------------------------------------------------------------

def mlp_pallas(x1, x2, x3, ea_r, params, *, tm=None):
    """x1/x2/x3: [T, H], ea_r: [T, 3H]  ->  [T, H]; rows tiled in blocks of `tm`."""
    T, H = x1.shape
    w1, b1, w2, b2, w3, b3 = params
    d1, d2, d3 = w1.shape[1], w2.shape[1], w3.shape[1]
    if tm is None:
        tm = _pick_row_tile(T)
    grid = (pl.cdiv(T, tm),)

    # Rough VMEM working-set estimate: 2x (double buffer) weights + activation tiles.
    wbytes = (w1.size + w2.size + w3.size) * w1.dtype.itemsize
    abytes = 4 * tm * (3 * H + 3 * H + d1 + d2 + 2 * d3)
    cparams = _compiler_params(2 * wbytes + 2 * abytes)

    def row(d):
        return pl.BlockSpec((tm, d), lambda i: (i, 0))

    def full(a):
        return pl.BlockSpec(a.shape, lambda i: (0, 0))

    # NOTE: d3 (= hid_dim) < 128 means masked partial stores on the output; padding
    # hid_dim to 128 is a model-level change, so it is not done here.
    return pl.pallas_call(
        _mlp_kernel,
        out_shape=jax.ShapeDtypeStruct((T, d3), x1.dtype),
        grid=grid,
        in_specs=[row(H), row(H), row(H), row(3 * H),
                  full(w1), full(b1), full(w2), full(b2), full(w3), full(b3)],
        out_specs=row(d3),
        compiler_params=cparams,
    )(x1, x2, x3, ea_r, w1, b1, w2, b2, w3, b3)


def add6_pallas(x1, x2, x3, ea_r, *, tm=None):
    """x1/x2/x3: [T, H], ea_r: [T, 3H] -> elementwise 6-way sum [T, H]."""
    T, H = x1.shape
    if tm is None:
        tm = _pick_row_tile(T)
    grid = (pl.cdiv(T, tm),)
    cparams = _compiler_params(2 * 4 * tm * 7 * H)

    def row(d):
        return pl.BlockSpec((tm, d), lambda i: (i, 0))

    return pl.pallas_call(
        _add6_kernel,
        out_shape=jax.ShapeDtypeStruct((T, H), x1.dtype),
        grid=grid,
        in_specs=[row(H), row(H), row(H), row(3 * H)],
        out_specs=row(H),
        compiler_params=cparams,
    )(x1, x2, x3, ea_r)


# ---------------------------------------------------------------------------
# Plain-JAX glue: cumsum_pad0 / num2batch (bookkeeping, not hot compute)
# ---------------------------------------------------------------------------

def cumsum_pad0(num):
    return jnp.concatenate(
        [jnp.zeros((1,), dtype=num.dtype), jnp.cumsum(num[:-1], axis=0)], axis=0)


def num2batch(num_tuple_per_graph, total):
    # TODO(synk): num2batch stays in plain JAX — data-dependent output length
    # (scatter + cumsum) has no clean Pallas equivalent; `total` must be static.
    offset = cumsum_pad0(num_tuple_per_graph)
    b = jnp.zeros((total,), dtype=offset.dtype)
    b = b.at[offset].set(1)
    b = b.at[0].set(0)
    return jnp.cumsum(b, axis=0)


# ---------------------------------------------------------------------------
# Tuple3Encoder forward
# ---------------------------------------------------------------------------

def tuple3_encoder_forward(batch, params, mode="add"):
    assert mode in ("add", "concat")
    x = batch["x"]                         # [N, H]
    ti = batch["tuple_index"]              # [3, T] int32
    ea = batch["edge_attr"]                # [3*T, H]
    T = ti.shape[1]
    H = x.shape[1]

    x1 = jnp.take(x, ti[0], axis=0)
    x2 = jnp.take(x, ti[1], axis=0)
    x3 = jnp.take(x, ti[2], axis=0)
    # Rows 3i, 3i+1, 3i+2 of edge_attr are contiguous: a free reshape to [T, 3H]
    # replaces three strided gathers and three [T, H] HBM intermediates.
    ea_r = ea.reshape(T, 3 * H)

    if mode == "concat":
        new_x = mlp_pallas(x1, x2, x3, ea_r, params)
    else:
        new_x = add6_pallas(x1, x2, x3, ea_r)

    out = dict(batch)
    out["x"] = new_x
    out["batch_original"] = batch["batch"]
    out["batch_tuple"] = num2batch(batch["num_tuple_per_graph"], T)
    out["batch"] = out["batch_tuple"]
    return out


# ---------------------------------------------------------------------------
# Deterministic parameter init (torch.nn.Linear-style uniform); weights -> bf16
# ---------------------------------------------------------------------------

def init_params(key, hid_dim):
    dims = [(hid_dim * 6, hid_dim * 6),
            (hid_dim * 6, hid_dim * 3),
            (hid_dim * 3, hid_dim)]
    params = []
    for (fan_in, fan_out) in dims:
        key, kw, kb = jax.random.split(key, 3)
        bound = 1.0 / (fan_in ** 0.5)
        w = jax.random.uniform(kw, (fan_in, fan_out), jnp.float32, -bound, bound)
        b = jax.random.uniform(kb, (1, fan_out), jnp.float32, -bound, bound)
        params += [w.astype(jnp.bfloat16), b]   # bf16 weights, f32 biases
    return tuple(params)


# ---------------------------------------------------------------------------
# Pure-JAX references (mirroring the kernel's bf16-in / f32-accumulate math)
# ---------------------------------------------------------------------------

def _bdot(a, b):
    return jnp.dot(a.astype(jnp.bfloat16), b.astype(jnp.bfloat16),
                   preferred_element_type=jnp.float32)


def mlp_ref(x1, x2, x3, ea_r, params):
    w1, b1, w2, b2, w3, b3 = params
    H = x1.shape[1]
    h = (_bdot(x1, w1[0 * H:1 * H]) + _bdot(x2, w1[1 * H:2 * H])
         + _bdot(x3, w1[2 * H:3 * H]) + _bdot(ea_r, w1[3 * H:6 * H]) + b1)
    h = jax.nn.relu(h)
    h = jax.nn.relu(_bdot(h, w2) + b2)
    return _bdot(h, w3) + b3


def add6_ref(x1, x2, x3, ea_r):
    H = x1.shape[1]
    return (x1 + x2 + x3
            + ea_r[:, 0 * H:1 * H] + ea_r[:, 1 * H:2 * H] + ea_r[:, 2 * H:3 * H])


if __name__ == "__main__":
    key = jax.random.PRNGKey(0)
    hid_dim = 32
    N = 16          # number of nodes
    T = 8           # number of 3-tuples
    num_graphs = 2

    k1, k2, k3, k4, kp = jax.random.split(key, 5)
    x = jax.random.normal(k1, (N, hid_dim), dtype=jnp.float32)
    tuple_index = jax.random.randint(k2, (3, T), 0, N, dtype=jnp.int32)
    edge_attr = jax.random.normal(k3, (3 * T, hid_dim), dtype=jnp.float32)
    node_batch = jnp.concatenate(
        [jnp.zeros((N // 2,), jnp.int32), jnp.ones((N - N // 2,), jnp.int32)])
    num_tuple_per_graph = jnp.array([5, 3], dtype=jnp.int32)  # sums to T

    batch = {
        "x": x,
        "tuple_index": tuple_index,
        "edge_attr": edge_attr,
        "batch": node_batch,
        "num_tuple_per_graph": num_tuple_per_graph,
    }

    params = init_params(kp, hid_dim)

    x1 = x[tuple_index[0]]; x2 = x[tuple_index[1]]; x3 = x[tuple_index[2]]
    ea_r = edge_attr.reshape(T, 3 * hid_dim)

    # --- 'add' mode (cfg default) ---
    out_add = tuple3_encoder_forward(batch, params, mode="add")
    jax.block_until_ready(out_add["x"])
    ref_add = add6_ref(x1, x2, x3, ea_r)
    assert jnp.allclose(out_add["x"], ref_add, atol=1e-5, rtol=1e-5)
    assert out_add["x"].shape == (T, hid_dim)

    # --- 'concat' mode ---
    out_cat = tuple3_encoder_forward(batch, params, mode="concat")
    jax.block_until_ready(out_cat["x"])
    ref_cat = mlp_ref(x1, x2, x3, ea_r, params)
    assert jnp.allclose(out_cat["x"], ref_cat, atol=2e-3, rtol=2e-3)
    assert out_cat["x"].shape == (T, hid_dim)

    # --- batch bookkeeping ---
    ref_batch_tuple = jnp.array([0] * 5 + [1] * 3, dtype=jnp.int32)
    assert jnp.array_equal(out_add["batch_tuple"].astype(jnp.int32), ref_batch_tuple)
    assert jnp.array_equal(out_add["batch_original"], node_batch)

    # --- multi-step grid + partial last block (small tm forced) ---
    T2 = 20
    ka, kb, kc, kd = jax.random.split(k4, 4)
    a1 = jax.random.normal(ka, (T2, hid_dim), jnp.float32)
    a2 = jax.random.normal(kb, (T2, hid_dim), jnp.float32)
    a3 = jax.random.normal(kc, (T2, hid_dim), jnp.float32)
    ae = jax.random.normal(kd, (T2, 3 * hid_dim), jnp.float32)
    add2 = add6_pallas(a1, a2, a3, ae, tm=8)
    jax.block_until_ready(add2)
    assert jnp.allclose(add2, add6_ref(a1, a2, a3, ae), atol=1e-5, rtol=1e-5)
    mlp2 = mlp_pallas(a1, a2, a3, ae, params, tm=8)
    jax.block_until_ready(mlp2)
    assert jnp.allclose(mlp2, mlp_ref(a1, a2, a3, ae, params), atol=2e-3, rtol=2e-3)

    print("KERNEL_OK")
</pallas_src>

<mosaic_0001>
module attributes {stable_mosaic.version = 11 : i64} {
  func.func @_add6_kernel(%arg0: i32, %arg1: memref<8x32xf32, #tpu.memory_space<vmem>>, %arg2: memref<8x32xf32, #tpu.memory_space<vmem>>, %arg3: memref<8x32xf32, #tpu.memory_space<vmem>>, %arg4: memref<8x96xf32, #tpu.memory_space<vmem>>, %arg5: memref<8x32xf32, #tpu.memory_space<vmem>>) attributes {dimension_semantics = [#tpu.dimension_semantics<parallel>], iteration_bounds = array<i64: 1>, scalar_prefetch = 0 : i64, scratch_operands = 0 : i64, tpu.core_type = #tpu.core_type<tc>, window_params = [{transform_indices = @transform_0, window_bounds = array<i64: 8, 32>}, {transform_indices = @transform_1, window_bounds = array<i64: 8, 32>}, {transform_indices = @transform_2, window_bounds = array<i64: 8, 32>}, {transform_indices = @transform_3, window_bounds = array<i64: 8, 96>}, {transform_indices = @transform_4, window_bounds = array<i64: 8, 32>}]} {
    %c0 = arith.constant 0 : index
    %c0_0 = arith.constant 0 : index
    %0 = vector.load %arg4[%c0, %c0_0] : memref<8x96xf32, #tpu.memory_space<vmem>>, vector<8x96xf32>
    %c0_1 = arith.constant 0 : index
    %c0_2 = arith.constant 0 : index
    %1 = vector.load %arg1[%c0_1, %c0_2] : memref<8x32xf32, #tpu.memory_space<vmem>>, vector<8x32xf32>
    %c0_3 = arith.constant 0 : index
    %c0_4 = arith.constant 0 : index
    %2 = vector.load %arg2[%c0_3, %c0_4] : memref<8x32xf32, #tpu.memory_space<vmem>>, vector<8x32xf32>
    %3 = arith.addf %1, %2 : vector<8x32xf32>
    %c0_5 = arith.constant 0 : index
    %c0_6 = arith.constant 0 : index
    %4 = vector.load %arg3[%c0_5, %c0_6] : memref<8x32xf32, #tpu.memory_space<vmem>>, vector<8x32xf32>
    %5 = arith.addf %3, %4 : vector<8x32xf32>
    %6 = vector.extract_strided_slice %0 {offsets = [0, 0], sizes = [8, 32], strides = [1, 1]} : vector<8x96xf32> to vector<8x32xf32>
    %7 = arith.addf %5, %6 : vector<8x32xf32>
    %8 = vector.extract_strided_slice %0 {offsets = [0, 32], sizes = [8, 32], strides = [1, 1]} : vector<8x96xf32> to vector<8x32xf32>
    %9 = arith.addf %7, %8 : vector<8x32xf32>
    %10 = vector.extract_strided_slice %0 {offsets = [0, 64], sizes = [8, 32], strides = [1, 1]} : vector<8x96xf32> to vector<8x32xf32>
    %11 = arith.addf %9, %10 : vector<8x32xf32>
    %c0_7 = arith.constant 0 : index
    %c0_8 = arith.constant 0 : index
    %12 = vector.load %arg5[%c0_7, %c0_8] : memref<8x32xf32, #tpu.memory_space<vmem>>, vector<8x32xf32>
    tpu.vector_store %arg5[%c0_7, %c0_8], %11 {strides = array<i32>} : memref<8x32xf32, #tpu.memory_space<vmem>>, vector<8x32xf32>,
    return
  }
  func.func @transform_0(%arg0: i32) -> (i32, i32) {
    %c0_i32 = arith.constant 0 : i32
    %c0_i32_0 = arith.constant 0 : i32
    return %arg0, %c0_i32 : i32, i32
  }
  func.func @transform_1(%arg0: i32) -> (i32, i32) {
    %c0_i32 = arith.constant 0 : i32
    %c0_i32_0 = arith.constant 0 : i32
    return %arg0, %c0_i32 : i32, i32
  }
  func.func @transform_2(%arg0: i32) -> (i32, i32) {
    %c0_i32 = arith.constant 0 : i32
    %c0_i32_0 = arith.constant 0 : i32
    return %arg0, %c0_i32 : i32, i32
  }
  func.func @transform_3(%arg0: i32) -> (i32, i32) {
    %c0_i32 = arith.constant 0 : i32
    %c0_i32_0 = arith.constant 0 : i32
    return %arg0, %c0_i32 : i32, i32
  }
  func.func @transform_4(%arg0: i32) -> (i32, i32) {
    %c0_i32 = arith.constant 0 : i32
    %c0_i32_0 = arith.constant 0 : i32
    return %arg0, %c0_i32 : i32, i32
  }
}

</mosaic_0001>

<llo_original>
// kernel: tpu_custom_call.1
$region0: #{tpu_custom_call.1}
  #allocation0 [shape = 'u32[]', space=smem, size = 0x4, offset = 0x4, fixed_abs, tag = 'smem constant byte address 0x4 - core index']
  #allocation1 [shape = 'u32[144,128]{1,0:T(1,128)}', space=vmem, size = 0x12000, scoped, tag = 'internal scratch']
  %s0 = inlined_call_operand.hbm [shape: f32[8,32], index: 0, kind: input, shape index: {}]
  %s1 = inlined_call_operand.hbm [shape: f32[8,32], index: 1, kind: input, shape index: {}]
  %s2 = inlined_call_operand.hbm [shape: f32[8,32], index: 2, kind: input, shape index: {}]
  %s3 = inlined_call_operand.vmem [shape: f32[8,96], index: 3, kind: input, shape index: {}]
  %s4 = inlined_call_operand.hbm [shape: f32[8,32], index: 4, kind: output, shape index: {}]
  %s5 = sld [smem:[#allocation0]]
  $region38: #{tpu_custom_call.1} parent=0
    _
  %s7 = ssub.s32 1, %s5
  %s8 = scalar_select 0, %s7, %s5
  $region1: #{tpu_custom_call.1} parent=0
    #allocation2 [shape = 'u8[4096]{0}', space=vmem, size = 0x1000, scoped, tag = 'input window, operand 0, single buffered']
    #allocation3 [shape = 's32[1]{0}', space=sflag, size = 0x4, scoped, tag = 'scoped memory for tpu_custom_call.1']
    #allocation4 [shape = 's32[1]{0}', space=sflag, size = 0x4, scoped, tag = 'scoped memory for tpu_custom_call.1']
    #allocation5 [shape = 'u8[4096]{0}', space=vmem, size = 0x1000, scoped, tag = 'input window, operand 1, single buffered']
    #allocation6 [shape = 's32[1]{0}', space=sflag, size = 0x4, scoped, tag = 'scoped memory for tpu_custom_call.1']
    #allocation7 [shape = 'u8[4096]{0}', space=vmem, size = 0x1000, scoped, tag = 'input window, operand 2, single buffered']
    #allocation8 [shape = 'u8[4096]{0}', space=vmem, size = 0x1000, scoped, tag = 'output window, operand 0, single buffered']
    %9 = vsyncpa [#allocation3], 0
    %10 = vsyncpa [#allocation6], 0
    %11 = vsyncpa [#allocation4], 0
    // Predicated region
    $region2: #{tpu_custom_call.1} parent=1 // pred_check
      _
    $region3: #{tpu_custom_call.1} parent=1 // pred_check_branch
      %13 = sbr.rel (0) target = $region5
    $region4: #{tpu_custom_call.1} parent=1 // pred_region
      %s15 = ssub.s32 128, 128
      %16 = vsyncadd [#allocation3], %s15
      %s18 = sshll.u32 [#allocation2], 4
      %s19 = int_to_ptr.vmem [resolvable:$true] %s18
      %21 = dma.hbm_to_vmem [thread:$0]  %s0, 128, %s19, [#allocation3]
    $region5: #{tpu_custom_call.1} parent=1 // pred_fallthru
      _
    // Predicated region
    $region6: #{tpu_custom_call.1} parent=1 // pred_check
      _
    $region7: #{tpu_custom_call.1} parent=1 // pred_check_branch
      %23 = sbr.rel (0) target = $region9
    $region8: #{tpu_custom_call.1} parent=1 // pred_region
      %s25 = ssub.s32 128, 128
      %26 = vsyncadd [#allocation6], %s25
      %s28 = sshll.u32 [#allocation5], 4
      %s29 = int_to_ptr.vmem [resolvable:$true] %s28
      %31 = dma.hbm_to_vmem [thread:$0]  %s1, 128, %s29, [#allocation6]
    $region9: #{tpu_custom_call.1} parent=1 // pred_fallthru
      _
    // Predicated region
    $region10: #{tpu_custom_call.1} parent=1 // pred_check
      _
    $region11: #{tpu_custom_call.1} parent=1 // pred_check_branch
      %33 = sbr.rel (0) target = $region13
    $region12: #{tpu_custom_call.1} parent=1 // pred_region
      %s35 = ssub.s32 128, 128
      %36 = vsyncadd [#allocation6], %s35
      %s38 = sshll.u32 [#allocation7], 4
      %s39 = int_to_ptr.vmem [resolvable:$true] %s38
      %41 = dma.hbm_to_vmem [thread:$0]  %s2, 128, %s39, [#allocation6]
    $region13: #{tpu_custom_call.1} parent=1 // pred_fallthru
      _
    // Predicated region
    $region14: #{tpu_custom_call.1} parent=1 // pred_check
      _
    $region15: #{tpu_custom_call.1} parent=1 // pred_check_branch
      %43 = sbr.rel (0) target = $region17
    $region16: #{tpu_custom_call.1} parent=1 // pred_region
      _
    $region17: #{tpu_custom_call.1} parent=1 // pred_fallthru
      _
    // Predicated region
    $region18: #{tpu_custom_call.1} parent=1 // pred_check
      _
    $region19: #{tpu_custom_call.1} parent=1 // pred_check_branch
      %45 = sbr.rel (0) target = $region21
    $region20: #{tpu_custom_call.1} parent=1 // pred_region
      %46 = dma.done [#allocation3], 128
    $region21: #{tpu_custom_call.1} parent=1 // pred_fallthru
      _
    // Predicated region
    $region22: #{tpu_custom_call.1} parent=1 // pred_check
      _
    $region23: #{tpu_custom_call.1} parent=1 // pred_check_branch
      %48 = sbr.rel (0) target = $region25
    $region24: #{tpu_custom_call.1} parent=1 // pred_region
      %49 = dma.done [#allocation6], 128
    $region25: #{tpu_custom_call.1} parent=1 // pred_fallthru
      _
    // Predicated region
    $region26: #{tpu_custom_call.1} parent=1 // pred_check
      _
    $region27: #{tpu_custom_call.1} parent=1 // pred_check_branch
      %51 = sbr.rel (0) target = $region29
    $region28: #{tpu_custom_call.1} parent=1 // pred_region
      %52 = dma.done [#allocation6], 128
    $region29: #{tpu_custom_call.1} parent=1 // pred_fallthru
      _
    %v53 = vld [vmem:[%s3] sm:$0xff]
    %v54 = vld [vmem:[#allocation2] sm:$0xff]
    %v55 = vld [vmem:[#allocation5] sm:$0xff]
    %v56 = vadd.f32 %v54, %v55
    %v57 = vld [vmem:[#allocation7] sm:$0xff]
    %v58 = vadd.f32 %v56, %v57
    %v59 = vadd.f32 %v58, %v53
    %61 = vrot.lane.b32.xlu0 %v53, 96
    %v62 = vpop.permute.xlu0 %61
    %v64 = vadd.f32 %v59, %v62
    %65 = vrot.lane.b32.xlu0 %v53, 64
    %v66 = vpop.permute.xlu0 %65
    %v68 = vadd.f32 %v64, %v66
    %vm69 = vcmask 261120
    %70 = vst.msk [vmem:[#allocation8] sm:$0xff] %vm69, %v68
    // Predicated region
    $region30: #{tpu_custom_call.1} parent=1 // pred_check
      _
    $region31: #{tpu_custom_call.1} parent=1 // pred_check_branch
      %72 = sbr.rel (0) target = $region33
    $region32: #{tpu_custom_call.1} parent=1 // pred_region
      %s74 = ssub.s32 128, 128
      %75 = vsyncadd [#allocation4], %s74
      %s77 = sshll.u32 [#allocation8], 4
      %s78 = int_to_ptr.vmem [resolvable:$true] %s77
      %80 = dma.vmem_to_hbm [thread:$0]  %s78, 128, %s4, [#allocation4]
    $region33: #{tpu_custom_call.1} parent=1 // pred_fallthru
      _
    // Predicated region
    $region34: #{tpu_custom_call.1} parent=1 // pred_check
      _
    $region35: #{tpu_custom_call.1} parent=1 // pred_check_branch
      %82 = sbr.rel (0) target = $region37
    $region36: #{tpu_custom_call.1} parent=1 // pred_region
      %83 = dma.done [#allocation4], 128
    $region37: #{tpu_custom_call.1} parent=1 // pred_fallthru
      _
    %84 = vsyncpa [#allocation3], 1
    %85 = vsyncpa [#allocation6], 1
    %86 = vsyncpa [#allocation4], 1

</llo_original>
